<compile_context>
chip_gen: v7x
topology: tpu7x:2x2x1
jax: 0.10.0
libtpu: 0.0.40
codegen_flags: <defaults>
</compile_context>

<pallas_src>
import jax
import jax.numpy as jnp
from jax.experimental import pallas as pl
from jax.experimental.pallas import tpu as pltpu

_LANES = 128        # lane width of a vreg
_TILE_ROWS = 2048   # 2048 rows x 128 lanes x 4 B = 1 MiB per f32 tile


def _identity_kernel(x_ref, o_ref):
    # Forward pass of MaskNet: return x (pure identity / copy of the tile).
    o_ref[...] = x_ref[...]


def masknet_forward(x):
    """Pallas implementation of MaskNet.forward (identity)."""
    nelems = x.size
    cost = pl.CostEstimate(
        flops=0,
        transcendentals=0,
        bytes_accessed=2 * nelems * x.dtype.itemsize,
    )

    # Lane-dense tiled path: view the array as (rows, 128) so every store is
    # a full-lane (unmasked) vst, and tile the row axis in ~1 MiB chunks.
    if nelems % _LANES == 0 and nelems // _LANES >= 8:
        rows = nelems // _LANES
        flat = x.reshape(rows, _LANES)  # contiguous row-major view: free

        tile_rows = min(_TILE_ROWS, rows)
        tile_rows -= tile_rows % 8      # keep the 8-sublane granule
        grid = (pl.cdiv(rows, tile_rows),)

        out = pl.pallas_call(
            _identity_kernel,
            out_shape=jax.ShapeDtypeStruct((rows, _LANES), x.dtype),
            grid=grid,
            in_specs=[pl.BlockSpec((tile_rows, _LANES), lambda i: (i, 0))],
            out_specs=pl.BlockSpec((tile_rows, _LANES), lambda i: (i, 0)),
            input_output_aliases={0: 0},
            compiler_params=pltpu.CompilerParams(
                dimension_semantics=("parallel",)),
            cost_estimate=cost,
        )(flat)
        return out.reshape(x.shape)

    # Fallback for small / non-128-multiple shapes (e.g. (2, 300)): a single
    # full-array block equals the array dims, so the (8, 128) tiling rule is
    # trivially satisfied; the input is still aliased to the output.
    return pl.pallas_call(
        _identity_kernel,
        out_shape=jax.ShapeDtypeStruct(x.shape, x.dtype),
        in_specs=[pl.BlockSpec(x.shape, lambda: (0,) * x.ndim)],
        out_specs=pl.BlockSpec(x.shape, lambda: (0,) * x.ndim),
        input_output_aliases={0: 0},
        cost_estimate=cost,
    )(x)


def init_masknet_params(key):
    """Deterministic parameters matching MaskNet.__init__ (nn.Linear(300, 400)).

    Unused by forward() (identity), kept only for shape/semantic fidelity.
    """
    k_w, k_b = jax.random.split(key)
    bound = 1.0 / jnp.sqrt(300.0)  # PyTorch nn.Linear default init range
    fc_weight = jax.random.uniform(k_w, (400, 300), jnp.float32, -bound, bound)
    fc_bias = jax.random.uniform(k_b, (400,), jnp.float32, -bound, bound)
    return {"fc": {"weight": fc_weight, "bias": fc_bias}}


if __name__ == "__main__":
    key = jax.random.PRNGKey(0)
    k_params, k_x, k_x2 = jax.random.split(key, 3)

    # Parameters are declared (as in the PyTorch module) but unused by forward.
    params = init_masknet_params(k_params)

    # Small input consistent with the module (fc expects 300 input features).
    x = jax.random.normal(k_x, (2, 300), dtype=jnp.float32)
    y = jax.block_until_ready(masknet_forward(x))
    assert y.shape == x.shape and y.dtype == x.dtype
    assert bool(jnp.array_equal(y, x))

    # Also exercise the lane-dense tiled path (element count % 128 == 0).
    x2 = jax.random.normal(k_x2, (64, 256), dtype=jnp.float32)
    y2 = jax.block_until_ready(masknet_forward(x2))
    assert y2.shape == x2.shape and y2.dtype == x2.dtype
    assert bool(jnp.array_equal(y2, x2))

    print("KERNEL_OK")
</pallas_src>

<mosaic_0001>
module attributes {stable_mosaic.version = 11 : i64} {
  func.func @_identity_kernel(%arg0: memref<2x300xf32, #tpu.memory_space<vmem>>, %arg1: memref<2x300xf32, #tpu.memory_space<vmem>>) attributes {dimension_semantics = [], scalar_prefetch = 0 : i64, scratch_operands = 0 : i64, tpu.core_type = #tpu.core_type<tc>} {
    %c0 = arith.constant 0 : index
    %c0_0 = arith.constant 0 : index
    %0 = vector.load %arg0[%c0, %c0_0] : memref<2x300xf32, #tpu.memory_space<vmem>>, vector<2x300xf32>
    %c0_1 = arith.constant 0 : index
    %c0_2 = arith.constant 0 : index
    %1 = vector.load %arg1[%c0_1, %c0_2] : memref<2x300xf32, #tpu.memory_space<vmem>>, vector<2x300xf32>
    tpu.vector_store %arg1[%c0_1, %c0_2], %0 {strides = array<i32>} : memref<2x300xf32, #tpu.memory_space<vmem>>, vector<2x300xf32>,
    return
  }
}

</mosaic_0001>

<llo_original>
// kernel: tpu_custom_call.1
$region0: #{tpu_custom_call.1}
  #allocation0 [shape = 'u32[]', space=smem, size = 0x4, offset = 0x4, fixed_abs, tag = 'smem constant byte address 0x4 - core index']
  #allocation1 [shape = 'u32[144,128]{1,0:T(1,128)}', space=vmem, size = 0x12000, scoped, tag = 'internal scratch']
  %s0 = inlined_call_operand.hbm [shape: f32[2,300], index: 0, kind: input, shape index: {}, may-alias: {0,1}]
  %s1 = inlined_call_operand.hbm [shape: f32[2,300], index: 1, kind: output, shape index: {}, may-alias: {0,1}]
  %s2 = sld [smem:[#allocation0]]
  $region18: #{tpu_custom_call.1} parent=0
    _
  %s4 = ssub.s32 1, %s2
  %s5 = scalar_select 0, %s4, %s2
  $region1: #{tpu_custom_call.1} parent=0
    #allocation2 [shape = 'u8[3072]{0}', space=vmem, size = 0xc00, scoped, tag = 'input window, operand 0, single buffered']
    #allocation3 [shape = 's32[1]{0}', space=sflag, size = 0x4, scoped, tag = 'scoped memory for tpu_custom_call.1']
    #allocation4 [shape = 's32[1]{0}', space=sflag, size = 0x4, scoped, tag = 'scoped memory for tpu_custom_call.1']
    #allocation5 [shape = 'u8[3072]{0}', space=vmem, size = 0xc00, scoped, tag = 'output window, operand 0, single buffered']
    %6 = vsyncpa [#allocation3], 0
    %7 = vsyncpa [#allocation4], 0
    // Predicated region
    $region2: #{tpu_custom_call.1} parent=1 // pred_check
      _
    $region3: #{tpu_custom_call.1} parent=1 // pred_check_branch
      %9 = sbr.rel (0) target = $region5
    $region4: #{tpu_custom_call.1} parent=1 // pred_region
      %s11 = ssub.s32 96, 96
      %12 = vsyncadd [#allocation3], %s11
      %s14 = sshll.u32 [#allocation2], 4
      %s15 = int_to_ptr.vmem [resolvable:$true] %s14
      %17 = dma.hbm_to_vmem [thread:$0]  %s0, 96, %s15, [#allocation3]
    $region5: #{tpu_custom_call.1} parent=1 // pred_fallthru
      _
    // Predicated region
    $region6: #{tpu_custom_call.1} parent=1 // pred_check
      _
    $region7: #{tpu_custom_call.1} parent=1 // pred_check_branch
      %19 = sbr.rel (0) target = $region9
    $region8: #{tpu_custom_call.1} parent=1 // pred_region
      %20 = dma.done [#allocation3], 96
    $region9: #{tpu_custom_call.1} parent=1 // pred_fallthru
      _
    %v21 = vld [vmem:[#allocation2] sm:$0x3f]
    %vm22 = vcmask 1041408
    %vm23 = vcmask 1043458
    %vm24 = vmor %vm23, %vm22
    %vm25 = vcmask 357380
    %vm26 = vmor %vm25, %vm24
    %27 = vst.msk [vmem:[#allocation5] sm:$0x3f] %vm26, %v21
    // Predicated region
    $region10: #{tpu_custom_call.1} parent=1 // pred_check
      _
    $region11: #{tpu_custom_call.1} parent=1 // pred_check_branch
      %29 = sbr.rel (0) target = $region13
    $region12: #{tpu_custom_call.1} parent=1 // pred_region
      %s31 = ssub.s32 96, 96
      %32 = vsyncadd [#allocation4], %s31
      %s34 = sshll.u32 [#allocation5], 4
      %s35 = int_to_ptr.vmem [resolvable:$true] %s34
      %37 = dma.vmem_to_hbm [thread:$0]  %s35, 96, %s1, [#allocation4]
    $region13: #{tpu_custom_call.1} parent=1 // pred_fallthru
      _
    // Predicated region
    $region14: #{tpu_custom_call.1} parent=1 // pred_check
      _
    $region15: #{tpu_custom_call.1} parent=1 // pred_check_branch
      %39 = sbr.rel (0) target = $region17
    $region16: #{tpu_custom_call.1} parent=1 // pred_region
      %40 = dma.done [#allocation4], 96
    $region17: #{tpu_custom_call.1} parent=1 // pred_fallthru
      _
    %41 = vsyncpa [#allocation3], 1
    %42 = vsyncpa [#allocation4], 1

</llo_original>
